<compile_context>
chip_gen: v6e
topology: v6e:2x2x1
jax: 0.10.0
libtpu: 0.0.40
codegen_flags: <defaults>
</compile_context>

<pallas_src>
import jax
import jax.numpy as jnp
from jax import lax
from jax.experimental import pallas as pl
from jax.experimental.pallas import tpu as pltpu

LANE = 128


def _round_up(n, m):
    return (n + m - 1) // m * m


def _choose_row_tile(B):
    """Row-tile heuristic: >= 16 rows (bf16 sublane packing), target up to 256
    rows per tile (MXU M-fill on v6e/v7x), but keep >= 2 grid steps when the
    batch allows so the 'parallel' grid axis can shard across v7x's 2 TCs."""
    b16 = _round_up(max(B, 16), 16)
    if b16 <= 32:
        return b16                       # too small to split usefully
    return min(256, _round_up(b16 // 2, 16))


# ----------------------------- Pallas kernel ---------------------------------
def _denoiser_kernel(x_ref, emb_ref, wemb_ref, w1_ref, wt1_ref, w2_ref,
                     bias_ref, o_ref):
    """Fused conditional denoiser for one batch row-tile.

       ep    = emb @ Wemb           (Wemb block-diag: [:,:H]=t-MLP, [:,H:]=y-emb)
       temb  = SiLU(ep[:, :H] + bt0)
       h     = SiLU(x @ W1 + temb @ Wt1 + ep[:, H:] + b1)
       eps   = h @ W2 + b2
       bf16 MXU operands, f32 accumulation, f32 SiLU (v5e-safe), no scratch.
    """
    H = wt1_ref.shape[1]            # hidden width (128)
    D = w2_ref.shape[1]             # flattened data dim (256)

    # packed biases: row 0 -> bt0[:H], row 1 -> b1[:H], row 2 -> b2[:D]
    bt0 = bias_ref[0:1, :H]
    b1 = bias_ref[1:2, :H]
    b2 = bias_ref[2:3, :D]

    # one small dot (K = 2E = 64) yields both the time-MLP preactivation
    # (columns [:H]) and the class-embedding hidden contribution ([H:]);
    # the block-diagonal zero rows keep the cross terms out.
    emb = emb_ref[...]                                      # bf16 [TM, 2E]
    ep = jnp.dot(emb, wemb_ref[...], preferred_element_type=jnp.float32)

    temb = ep[:, :H] + bt0
    temb = temb * jax.nn.sigmoid(temb)                      # f32 SiLU

    # hidden layer: accumulating dots, x cast to bf16 in-kernel (no HBM copy)
    x_bf = x_ref[...].astype(jnp.bfloat16)
    h = (jnp.dot(x_bf, w1_ref[...], preferred_element_type=jnp.float32)
         + jnp.dot(temb.astype(jnp.bfloat16), wt1_ref[...],
                   preferred_element_type=jnp.float32)
         + ep[:, H:] + b1)
    h = h * jax.nn.sigmoid(h)

    # output projection (f32 accumulate + f32 bias, cast on store)
    o_ref[...] = (jnp.dot(h.astype(jnp.bfloat16), w2_ref[...],
                          preferred_element_type=jnp.float32)
                  + b2).astype(o_ref.dtype)


def denoiser_pallas(x_flat, emb, packed, out_dtype=jnp.float32):
    """x_flat: [B, D] f32, emb: [B, 2E] bf16 ([t_sin | y_emb]) -> [B, D]."""
    B, D = x_flat.shape
    E2 = emb.shape[1]

    TM = _choose_row_tile(B)
    Bp = _round_up(B, TM)
    if Bp != B:                                   # only pad when B % TM != 0
        x_flat = jnp.pad(x_flat, ((0, Bp - B), (0, 0)))
        emb = jnp.pad(emb, ((0, Bp - B), (0, 0)))

    def row_spec(width):
        return pl.BlockSpec((TM, width), lambda i: (i, 0))

    def full_spec(arr):
        return pl.BlockSpec(arr.shape, lambda i: (0, 0))

    out = pl.pallas_call(
        _denoiser_kernel,
        out_shape=jax.ShapeDtypeStruct((Bp, D), out_dtype),
        grid=(Bp // TM,),
        in_specs=[row_spec(D), row_spec(E2),
                  full_spec(packed["wemb"]),
                  full_spec(packed["w1"]),
                  full_spec(packed["wt1"]),
                  full_spec(packed["w2"]),
                  full_spec(packed["bias"])],
        out_specs=row_spec(D),
        compiler_params=pltpu.CompilerParams(
            dimension_semantics=("parallel",)),   # batch tiles shard on v7x
    )(x_flat, emb, packed["wemb"], packed["w1"], packed["wt1"], packed["w2"],
      packed["bias"])

    return out[:B] if Bp != B else out


# --------------------------- synthetic model glue -----------------------------
def sinusoidal_embedding(t, dim):
    """t: [B] int -> [B, dim] f32 sin/cos embedding."""
    half = dim // 2
    freqs = jnp.exp(-jnp.log(10000.0) * jnp.arange(half, dtype=jnp.float32) / half)
    angles = t.astype(jnp.float32)[:, None] * freqs[None, :]
    return jnp.concatenate([jnp.sin(angles), jnp.cos(angles)], axis=-1)


def init_model_params(key, D, E, H, num_classes):
    ks = jax.random.split(key, 9)
    s = lambda fan_in: 1.0 / jnp.sqrt(fan_in)
    return {
        "class_emb": jax.random.normal(ks[0], (num_classes, E), jnp.float32) * 0.02,
        "wt0": jax.random.normal(ks[1], (E, H), jnp.float32) * s(E),
        "bt0": jax.random.normal(ks[6], (1, H), jnp.float32) * 0.01,
        "w1":  jax.random.normal(ks[2], (D, H), jnp.float32) * s(D),
        "wt1": jax.random.normal(ks[3], (H, H), jnp.float32) * s(H),
        "wy1": jax.random.normal(ks[4], (E, H), jnp.float32) * s(E),
        "b1":  jax.random.normal(ks[7], (1, H), jnp.float32) * 0.01,
        "w2":  jax.random.normal(ks[5], (H, D), jnp.float32) * s(H),
        "b2":  jax.random.normal(ks[8], (1, D), jnp.float32) * 0.01,
    }


def pack_params(params):
    """One-time host-side packing.

    wemb is block-diagonal over the packed [t_sin | y_emb] input:
      rows [0:E)  x cols [0:H)   = Wt0   (time-MLP)
      rows [E:2E) x cols [H:2H)  = Wy1   (class-embedding -> hidden)
    Biases are packed into one (3, max(D,H)) f32 array.
    """
    D, H = params["w1"].shape
    E = params["wt0"].shape[0]
    assert D % LANE == 0 and H % LANE == 0

    wemb = jnp.zeros((2 * E, 2 * H), jnp.float32)
    wemb = wemb.at[:E, :H].set(params["wt0"])
    wemb = wemb.at[E:, H:].set(params["wy1"])

    bias_w = max(D, H)
    bias = jnp.zeros((3, bias_w), jnp.float32)
    bias = bias.at[0, :H].set(params["bt0"].reshape(-1))
    bias = bias.at[1, :H].set(params["b1"].reshape(-1))
    bias = bias.at[2, :D].set(params["b2"].reshape(-1))

    return {
        "wemb": wemb.astype(jnp.bfloat16),
        "w1": params["w1"].astype(jnp.bfloat16),
        "wt1": params["wt1"].astype(jnp.bfloat16),
        "w2": params["w2"].astype(jnp.bfloat16),
        "bias": bias,                       # f32 (added after f32 accumulation)
        "class_emb": params["class_emb"],   # f32, gathered in the jit wrapper
        "E": E, "H": H, "D": D,
    }


def linear_beta_schedule(T, beta_start=1e-4, beta_end=0.02):
    return jnp.linspace(beta_start, beta_end, T, dtype=jnp.float32)


class CondDiffusionJAX:
    """JAX/Pallas port of CondDiffusion (forward pass + scan-based sampling)."""

    def __init__(self, data_shape, params, T=300):
        self.data_shape = tuple(data_shape)
        self.T = T
        self.packed = pack_params(params)

        # _init_scalars equivalent (schedule buffers; plain JAX setup glue)
        self.beta = linear_beta_schedule(T)
        self.alpha = 1.0 - self.beta
        self.cumprod_alpha = jnp.cumprod(self.alpha, axis=0)
        self.alphas_cumprod_prev = jnp.pad(self.cumprod_alpha[:-1], (1, 0),
                                           constant_values=1.0)
        self.sqrt_recip_alphas = jnp.sqrt(1.0 / self.alpha)
        self.sqrt_alphas_cumprod = jnp.sqrt(self.cumprod_alpha)
        self.sqrt_one_minus_alphas_cumprod = jnp.sqrt(1.0 - self.cumprod_alpha)
        self.posterior_variance = (self.beta * (1.0 - self.alphas_cumprod_prev)
                                   / (1.0 - self.cumprod_alpha))

        packed = self.packed

        def _fwd(x, t_vec, y):
            B = x.shape[0]
            D, E = packed["D"], packed["E"]
            x_flat = x.reshape(B, D)                         # torch .view(B, -1)
            t_sin = sinusoidal_embedding(t_vec, E)
            y_emb = jnp.take(packed["class_emb"], y, axis=0)
            # pack [t_sin | y_emb] into one small bf16 stream (2E = 64 lanes)
            emb = jnp.concatenate([t_sin, y_emb], axis=-1).astype(jnp.bfloat16)
            eps_flat = denoiser_pallas(x_flat, emb, packed)
            return eps_flat.reshape(x.shape)

        self._fwd_core = _fwd
        self._fwd = jax.jit(_fwd)

        beta = self.beta
        sqrt_recip_alphas = self.sqrt_recip_alphas
        sqrt_om = self.sqrt_one_minus_alphas_cumprod
        post_var = self.posterior_variance

        def _sample(key, y):
            # whole T-step reverse loop as ONE jitted lax.scan (one dispatch)
            key, k0 = jax.random.split(key)
            x0 = jax.random.normal(k0, (1, 1) + self.data_shape, jnp.float32)

            def step(carry, t):
                x_t, key = carry
                key, sub = jax.random.split(key)
                t_vec = jnp.full((1,), t, jnp.int32)
                eps = _fwd(x_t, t_vec, y)
                mean = sqrt_recip_alphas[t] * (
                    x_t - beta[t] * eps / sqrt_om[t])
                noise = jnp.where(t > 0,
                                  jax.random.normal(sub, x_t.shape, x_t.dtype),
                                  jnp.zeros_like(x_t))
                x_next = mean + jnp.sqrt(post_var[t]) * noise
                return (x_next, key), None

            ts = jnp.arange(self.T - 1, -1, -1)
            (x_final, _), _ = lax.scan(step, (x0, key), ts)
            return x_final

        self._sample = jax.jit(_sample)

    def model(self, x, t, y):
        """x: [B, C, H, W] f32, t: [B] int, y: [B] int -> eps [B, C, H, W]."""
        return self._fwd(x, t, y)

    def forward(self, x, t, y):
        # exact semantics: self.model(x, t.squeeze(-1), y)
        return self.model(x, jnp.squeeze(t, axis=-1), y)

    def __call__(self, x, t, y):
        return self.forward(x, t, y)

    def sample(self, key, y):
        """Reverse-diffusion sampling: single jitted scan over T steps."""
        return self._sample(key, y)


# ------------------------ pure-JAX reference (bf16-matched) -------------------
def reference_forward(params, x, t, y):
    B, C, Hh, Ww = x.shape
    D = C * Hh * Ww
    E = params["wt0"].shape[0]
    bf = lambda a: a.astype(jnp.bfloat16).astype(jnp.float32)

    x_flat = x.reshape(B, D)
    t_sin = sinusoidal_embedding(jnp.squeeze(t, axis=-1), E)
    y_emb = jnp.take(params["class_emb"], y, axis=0)

    temb = bf(t_sin) @ bf(params["wt0"]) + params["bt0"]
    temb = temb * jax.nn.sigmoid(temb)
    h = (bf(x_flat) @ bf(params["w1"]) + bf(temb) @ bf(params["wt1"])
         + bf(y_emb) @ bf(params["wy1"]) + params["b1"])
    h = h * jax.nn.sigmoid(h)
    eps = bf(h) @ bf(params["w2"]) + params["b2"]
    return eps.reshape(B, C, Hh, Ww)


# ---------------------------------- main --------------------------------------
if __name__ == "__main__":
    key = jax.random.PRNGKey(0)
    k_param, k_x, k_t, k_y, k_s = jax.random.split(key, 5)

    B, C, H, W = 2, 1, 16, 16      # data_shape = (16, 16), NCHW with C=1
    D = C * H * W                  # 256
    E = 32                         # time / class embedding dim
    HID = 128                      # hidden width
    NUM_CLASSES = 10
    T = 300

    params = init_model_params(k_param, D, E, HID, NUM_CLASSES)
    diffusion = CondDiffusionJAX((H, W), params, T=T)

    x = jax.random.normal(k_x, (B, C, H, W), jnp.float32)
    t = jax.random.randint(k_t, (B, 1), 0, T, jnp.int32)   # t.squeeze(-1) in forward
    y = jax.random.randint(k_y, (B,), 0, NUM_CLASSES, jnp.int32)

    out = diffusion(x, t, y)
    out = jax.block_until_ready(out)
    assert out.shape == (B, C, H, W) and out.dtype == jnp.float32

    ref = reference_forward(params, x, t, y)
    max_err = float(jnp.max(jnp.abs(out - ref)))
    assert jnp.allclose(out, ref, rtol=2e-2, atol=2e-2), f"max abs err {max_err}"

    # scan-based reverse-diffusion sampling (one dispatch for all T steps)
    sample = diffusion.sample(k_s, jnp.array([3], jnp.int32))
    sample = jax.block_until_ready(sample)
    assert sample.shape == (1, 1, H, W)

    print("KERNEL_OK")
</pallas_src>

<mosaic_0001>
module attributes {stable_mosaic.version = 11 : i64} {
  func.func @_denoiser_kernel(%arg0: i32, %arg1: memref<16x256xf32, #tpu.memory_space<vmem>>, %arg2: memref<16x64xbf16, #tpu.memory_space<vmem>>, %arg3: memref<64x256xbf16, #tpu.memory_space<vmem>>, %arg4: memref<256x128xbf16, #tpu.memory_space<vmem>>, %arg5: memref<128x128xbf16, #tpu.memory_space<vmem>>, %arg6: memref<128x256xbf16, #tpu.memory_space<vmem>>, %arg7: memref<3x256xf32, #tpu.memory_space<vmem>>, %arg8: memref<16x256xf32, #tpu.memory_space<vmem>>) attributes {dimension_semantics = [#tpu.dimension_semantics<parallel>], iteration_bounds = array<i64: 1>, scalar_prefetch = 0 : i64, scratch_operands = 0 : i64, tpu.core_type = #tpu.core_type<tc>, window_params = [{transform_indices = @transform_0, window_bounds = array<i64: 16, 256>}, {transform_indices = @transform_1, window_bounds = array<i64: 16, 64>}, {pipeline_mode = #tpu.pipeline_mode<synchronous>, transform_indices = @transform_2, window_bounds = array<i64: 64, 256>}, {pipeline_mode = #tpu.pipeline_mode<synchronous>, transform_indices = @transform_3, window_bounds = array<i64: 256, 128>}, {pipeline_mode = #tpu.pipeline_mode<synchronous>, transform_indices = @transform_4, window_bounds = array<i64: 128, 128>}, {pipeline_mode = #tpu.pipeline_mode<synchronous>, transform_indices = @transform_5, window_bounds = array<i64: 128, 256>}, {pipeline_mode = #tpu.pipeline_mode<synchronous>, transform_indices = @transform_6, window_bounds = array<i64: 3, 256>}, {transform_indices = @transform_7, window_bounds = array<i64: 16, 256>}]} {
    %c0 = arith.constant 0 : index
    %c0_0 = arith.constant 0 : index
    %0 = vector.load %arg7[%c0, %c0_0] : memref<3x256xf32, #tpu.memory_space<vmem>>, vector<1x128xf32>
    %c1 = arith.constant 1 : index
    %c0_1 = arith.constant 0 : index
    %1 = vector.load %arg7[%c1, %c0_1] : memref<3x256xf32, #tpu.memory_space<vmem>>, vector<1x128xf32>
    %c2 = arith.constant 2 : index
    %c0_2 = arith.constant 0 : index
    %2 = vector.load %arg7[%c2, %c0_2] : memref<3x256xf32, #tpu.memory_space<vmem>>, vector<1x256xf32>
    %c0_3 = arith.constant 0 : index
    %c0_4 = arith.constant 0 : index
    %3 = vector.load %arg2[%c0_3, %c0_4] : memref<16x64xbf16, #tpu.memory_space<vmem>>, vector<16x64xbf16>
    %c0_5 = arith.constant 0 : index
    %c0_6 = arith.constant 0 : index
    %4 = vector.load %arg3[%c0_5, %c0_6] : memref<64x256xbf16, #tpu.memory_space<vmem>>, vector<64x256xbf16>
    %cst = arith.constant dense<0.000000e+00> : vector<16x256xf32>
    %5 = tpu.matmul %3, %4, %cst {dimension_numbers = #tpu.dot_dimension_numbers<[1], [0], [0], [1], [0, 0, 1, 1], [], []>} : vector<16x64xbf16>, vector<64x256xbf16>, vector<16x256xf32> -> vector<16x256xf32>
    %6 = vector.extract_strided_slice %5 {offsets = [0, 0], sizes = [16, 128], strides = [1, 1]} : vector<16x256xf32> to vector<16x128xf32>
    %7 = vector.broadcast %0 : vector<1x128xf32> to vector<16x128xf32>
    %8 = arith.addf %6, %7 : vector<16x128xf32>
    %9 = arith.negf %8 : vector<16x128xf32>
    %10 = math.exp %9 : vector<16x128xf32>
    %cst_7 = arith.constant 1.000000e+00 : f32
    %11 = vector.broadcast %cst_7 : f32 to vector<16x128xf32>
    %12 = arith.addf %11, %10 : vector<16x128xf32>
    %13 = arith.divf %11, %12 : vector<16x128xf32>
    %14 = arith.mulf %8, %13 : vector<16x128xf32>
    %c0_8 = arith.constant 0 : index
    %c0_9 = arith.constant 0 : index
    %15 = vector.load %arg1[%c0_8, %c0_9] : memref<16x256xf32, #tpu.memory_space<vmem>>, vector<16x256xf32>
    %16 = arith.truncf %15 : vector<16x256xf32> to vector<16x256xbf16>
    %c0_10 = arith.constant 0 : index
    %c0_11 = arith.constant 0 : index
    %17 = vector.load %arg4[%c0_10, %c0_11] : memref<256x128xbf16, #tpu.memory_space<vmem>>, vector<256x128xbf16>
    %cst_12 = arith.constant dense<0.000000e+00> : vector<16x128xf32>
    %18 = tpu.matmul %16, %17, %cst_12 {dimension_numbers = #tpu.dot_dimension_numbers<[1], [0], [0], [1], [0, 0, 1, 1], [], []>} : vector<16x256xbf16>, vector<256x128xbf16>, vector<16x128xf32> -> vector<16x128xf32>
    %19 = arith.truncf %14 : vector<16x128xf32> to vector<16x128xbf16>
    %c0_13 = arith.constant 0 : index
    %c0_14 = arith.constant 0 : index
    %20 = vector.load %arg5[%c0_13, %c0_14] : memref<128x128xbf16, #tpu.memory_space<vmem>>, vector<128x128xbf16>
    %cst_15 = arith.constant dense<0.000000e+00> : vector<16x128xf32>
    %21 = tpu.matmul %19, %20, %cst_15 {dimension_numbers = #tpu.dot_dimension_numbers<[1], [0], [0], [1], [0, 0, 1, 1], [], []>} : vector<16x128xbf16>, vector<128x128xbf16>, vector<16x128xf32> -> vector<16x128xf32>
    %22 = arith.addf %18, %21 : vector<16x128xf32>
    %23 = vector.extract_strided_slice %5 {offsets = [0, 128], sizes = [16, 128], strides = [1, 1]} : vector<16x256xf32> to vector<16x128xf32>
    %24 = arith.addf %22, %23 : vector<16x128xf32>
    %25 = vector.broadcast %1 : vector<1x128xf32> to vector<16x128xf32>
    %26 = arith.addf %24, %25 : vector<16x128xf32>
    %27 = arith.negf %26 : vector<16x128xf32>
    %28 = math.exp %27 : vector<16x128xf32>
    %cst_16 = arith.constant 1.000000e+00 : f32
    %29 = vector.broadcast %cst_16 : f32 to vector<16x128xf32>
    %30 = arith.addf %29, %28 : vector<16x128xf32>
    %31 = arith.divf %29, %30 : vector<16x128xf32>
    %32 = arith.mulf %26, %31 : vector<16x128xf32>
    %33 = arith.truncf %32 : vector<16x128xf32> to vector<16x128xbf16>
    %c0_17 = arith.constant 0 : index
    %c0_18 = arith.constant 0 : index
    %34 = vector.load %arg6[%c0_17, %c0_18] : memref<128x256xbf16, #tpu.memory_space<vmem>>, vector<128x256xbf16>
    %cst_19 = arith.constant dense<0.000000e+00> : vector<16x256xf32>
    %35 = tpu.matmul %33, %34, %cst_19 {dimension_numbers = #tpu.dot_dimension_numbers<[1], [0], [0], [1], [0, 0, 1, 1], [], []>} : vector<16x128xbf16>, vector<128x256xbf16>, vector<16x256xf32> -> vector<16x256xf32>
    %36 = vector.broadcast %2 : vector<1x256xf32> to vector<16x256xf32>
    %37 = arith.addf %35, %36 : vector<16x256xf32>
    %c0_20 = arith.constant 0 : index
    %c0_21 = arith.constant 0 : index
    %38 = vector.load %arg8[%c0_20, %c0_21] : memref<16x256xf32, #tpu.memory_space<vmem>>, vector<16x256xf32>
    tpu.vector_store %arg8[%c0_20, %c0_21], %37 {strides = array<i32>} : memref<16x256xf32, #tpu.memory_space<vmem>>, vector<16x256xf32>,
    return
  }
  func.func @transform_0(%arg0: i32) -> (i32, i32) {
    %c0_i32 = arith.constant 0 : i32
    %c0_i32_0 = arith.constant 0 : i32
    return %arg0, %c0_i32 : i32, i32
  }
  func.func @transform_1(%arg0: i32) -> (i32, i32) {
    %c0_i32 = arith.constant 0 : i32
    %c0_i32_0 = arith.constant 0 : i32
    return %arg0, %c0_i32 : i32, i32
  }
  func.func @transform_2(%arg0: i32) -> (i32, i32) {
    %c0_i32 = arith.constant 0 : i32
    %c0_i32_0 = arith.constant 0 : i32
    %c0_i32_1 = arith.constant 0 : i32
    return %c0_i32, %c0_i32_0 : i32, i32
  }
  func.func @transform_3(%arg0: i32) -> (i32, i32) {
    %c0_i32 = arith.constant 0 : i32
    %c0_i32_0 = arith.constant 0 : i32
    %c0_i32_1 = arith.constant 0 : i32
    return %c0_i32, %c0_i32_0 : i32, i32
  }
  func.func @transform_4(%arg0: i32) -> (i32, i32) {
    %c0_i32 = arith.constant 0 : i32
    %c0_i32_0 = arith.constant 0 : i32
    %c0_i32_1 = arith.constant 0 : i32
    return %c0_i32, %c0_i32_0 : i32, i32
  }
  func.func @transform_5(%arg0: i32) -> (i32, i32) {
    %c0_i32 = arith.constant 0 : i32
    %c0_i32_0 = arith.constant 0 : i32
    %c0_i32_1 = arith.constant 0 : i32
    return %c0_i32, %c0_i32_0 : i32, i32
  }
  func.func @transform_6(%arg0: i32) -> (i32, i32) {
    %c0_i32 = arith.constant 0 : i32
    %c0_i32_0 = arith.constant 0 : i32
    %c0_i32_1 = arith.constant 0 : i32
    return %c0_i32, %c0_i32_0 : i32, i32
  }
  func.func @transform_7(%arg0: i32) -> (i32, i32) {
    %c0_i32 = arith.constant 0 : i32
    %c0_i32_0 = arith.constant 0 : i32
    return %arg0, %c0_i32 : i32, i32
  }
}

</mosaic_0001>

<llo_original>
// kernel: _fwd.1
$region0: #{_fwd.1}
  #allocation0 [shape = 'u32[]', space=smem, size = 0x4, offset = 0x4, fixed_abs, tag = 'smem constant byte address 0x4 - core index']
  #allocation1 [shape = 'u32[144,128]{1,0:T(1,128)}', space=vmem, size = 0x12000, scoped, tag = 'internal scratch']
  %s0 = inlined_call_operand.vmem [shape: f32[16,256], index: 0, kind: input, shape index: {}]
  %s1 = inlined_call_operand.vmem [shape: bf16[16,64], index: 1, kind: input, shape index: {}]
  %s2 = inlined_call_operand.hbm [shape: bf16[64,256], index: 2, kind: input, shape index: {}]
  %s3 = inlined_call_operand.hbm [shape: bf16[256,128], index: 3, kind: input, shape index: {}]
  %s4 = inlined_call_operand.hbm [shape: bf16[128,128], index: 4, kind: input, shape index: {}]
  %s5 = inlined_call_operand.vmem [shape: bf16[128,256], index: 5, kind: input, shape index: {}]
  %s6 = inlined_call_operand.hbm [shape: f32[3,256], index: 6, kind: input, shape index: {}]
  %s7 = inlined_call_operand.vmem [shape: f32[16,256], index: 7, kind: output, shape index: {}]
  %s8 = sld [smem:[#allocation0]]
  $region54: #{_fwd.1} parent=0
    _
  %s10 = ssub.s32 1, %s8
  %s11 = scalar_select 0, %s10, %s8
  $region1: #{_fwd.1} parent=0
    #allocation2 [shape = 'u8[32768]{0}', space=vmem, size = 0x8000, scoped, tag = 'input window, operand 2, single buffered']
    #allocation3 [shape = 's32[1]{0}', space=sflag, size = 0x4, scoped, tag = 'scoped memory for _fwd.1']
    #allocation4 [shape = 'u8[65536]{0}', space=vmem, size = 0x10000, scoped, tag = 'input window, operand 3, single buffered']
    #allocation5 [shape = 's32[1]{0}', space=sflag, size = 0x4, scoped, tag = 'scoped memory for _fwd.1']
    #allocation6 [shape = 'u8[32768]{0}', space=vmem, size = 0x8000, scoped, tag = 'input window, operand 4, single buffered']
    #allocation7 [shape = 'u8[4096]{0}', space=vmem, size = 0x1000, scoped, tag = 'input window, operand 6, single buffered']
    #allocation8 [shape = 's32[1]{0}', space=sflag, size = 0x4, scoped, tag = 'scoped memory for _fwd.1']
    %12 = vsyncpa [#allocation3], 0
    %13 = vsyncpa [#allocation5], 0
    %14 = vsyncpa [#allocation8], 0
    // Predicated region
    $region2: #{_fwd.1} parent=1 // pred_check
      _
    $region3: #{_fwd.1} parent=1 // pred_check_branch
      %16 = sbr.rel (0) target = $region5
    $region4: #{_fwd.1} parent=1 // pred_region
      _
    $region5: #{_fwd.1} parent=1 // pred_fallthru
      _
    // Predicated region
    $region6: #{_fwd.1} parent=1 // pred_check
      _
    $region7: #{_fwd.1} parent=1 // pred_check_branch
      %18 = sbr.rel (0) target = $region9
    $region8: #{_fwd.1} parent=1 // pred_region
      _
    $region9: #{_fwd.1} parent=1 // pred_fallthru
      _
    // Predicated region
    $region10: #{_fwd.1} parent=1 // pred_check
      _
    $region11: #{_fwd.1} parent=1 // pred_check_branch
      %20 = sbr.rel (0) target = $region13
    $region12: #{_fwd.1} parent=1 // pred_region
      %s22 = ssub.s32 1024, 1024
      %23 = vsyncadd [#allocation3], %s22
      %s24 = sshll.u32 [#allocation2], 4
      %s25 = int_to_ptr.vmem [resolvable:$true] %s24
      %30 = dma.hbm_to_vmem [thread:$0]  %s2, 1024, %s25, [#allocation3], 128, 128, 8
    $region13: #{_fwd.1} parent=1 // pred_fallthru
      _
    // Predicated region
    $region14: #{_fwd.1} parent=1 // pred_check
      _
    $region15: #{_fwd.1} parent=1 // pred_check_branch
      %32 = sbr.rel (0) target = $region17
    $region16: #{_fwd.1} parent=1 // pred_region
      %s34 = ssub.s32 2048, 2048
      %35 = vsyncadd [#allocation5], %s34
      %s36 = sshll.u32 [#allocation4], 4
      %s37 = int_to_ptr.vmem [resolvable:$true] %s36
      %42 = dma.hbm_to_vmem [thread:$0]  %s3, 2048, %s37, [#allocation5], 64, 64, 4
    $region17: #{_fwd.1} parent=1 // pred_fallthru
      _
    // Predicated region
    $region18: #{_fwd.1} parent=1 // pred_check
      _
    $region19: #{_fwd.1} parent=1 // pred_check_branch
      %44 = sbr.rel (0) target = $region21
    $region20: #{_fwd.1} parent=1 // pred_region
      %s46 = ssub.s32 1024, 1024
      %47 = vsyncadd [#allocation5], %s46
      %s48 = sshll.u32 [#allocation6], 4
      %s49 = int_to_ptr.vmem [resolvable:$true] %s48
      %54 = dma.hbm_to_vmem [thread:$0]  %s4, 1024, %s49, [#allocation5], 64, 64, 4
    $region21: #{_fwd.1} parent=1 // pred_fallthru
      _
    // Predicated region
    $region22: #{_fwd.1} parent=1 // pred_check
      _
    $region23: #{_fwd.1} parent=1 // pred_check_branch
      %56 = sbr.rel (0) target = $region25
    $region24: #{_fwd.1} parent=1 // pred_region
      _
    $region25: #{_fwd.1} parent=1 // pred_fallthru
      _
    // Predicated region
    $region26: #{_fwd.1} parent=1 // pred_check
      _
    $region27: #{_fwd.1} parent=1 // pred_check_branch
      %58 = sbr.rel (0) target = $region29
    $region28: #{_fwd.1} parent=1 // pred_region
      %s60 = ssub.s32 128, 128
      %61 = vsyncadd [#allocation8], %s60
      %s63 = sshll.u32 [#allocation7], 4
      %s64 = int_to_ptr.vmem [resolvable:$true] %s63
      %66 = dma.hbm_to_vmem [thread:$0]  %s6, 128, %s64, [#allocation8]
    $region29: #{_fwd.1} parent=1 // pred_fallthru
      _
    // Predicated region
    $region30: #{_fwd.1} parent=1 // pred_check
      _
    $region31: #{_fwd.1} parent=1 // pred_check_branch
      %68 = sbr.rel (0) target = $region33
    $region32: #{_fwd.1} parent=1 // pred_region
      %69 = dma.done [#allocation3], 1024
    $region33: #{_fwd.1} parent=1 // pred_fallthru
      _
    // Predicated region
    $region34: #{_fwd.1} parent=1 // pred_check
      _
    $region35: #{_fwd.1} parent=1 // pred_check_branch
      %71 = sbr.rel (0) target = $region37
    $region36: #{_fwd.1} parent=1 // pred_region
      %72 = dma.done [#allocation5], 2048
    $region37: #{_fwd.1} parent=1 // pred_fallthru
      _
    // Predicated region
    $region38: #{_fwd.1} parent=1 // pred_check
      _
    $region39: #{_fwd.1} parent=1 // pred_check_branch
      %74 = sbr.rel (0) target = $region41
    $region40: #{_fwd.1} parent=1 // pred_region
      %75 = dma.done [#allocation5], 1024
    $region41: #{_fwd.1} parent=1 // pred_fallthru
      _
    // Predicated region
    $region42: #{_fwd.1} parent=1 // pred_check
      _
    $region43: #{_fwd.1} parent=1 // pred_check_branch
      %77 = sbr.rel (0) target = $region45
    $region44: #{_fwd.1} parent=1 // pred_region
      %78 = dma.done [#allocation8], 128
    $region45: #{_fwd.1} parent=1 // pred_fallthru
      _
    %v80 = vld [vmem:[#allocation7] sm:$0x1]
    %v81 = vld [vmem:[#allocation7 + $0x1] sm:$0x1]
    %s82 = scalar_lea.vmem [#allocation7], 2
    %v83 = vld [vmem:[%s82] ss:$4 sm:$0x3]
    %v84 = vld [vmem:[%s1] sm:$0xf]
    %v85 = vld [vmem:[%s1 + $0x4] sm:$0xf]
    %v86 = vld [vmem:[#allocation2] sm:$0xff]
    %v87 = vld [vmem:[#allocation2 + $0x8] sm:$0xff]
    %v88 = vld [vmem:[#allocation2 + $0x10] sm:$0xff]
    %v89 = vld [vmem:[#allocation2 + $0x18] sm:$0xff]
    %v90 = vld [vmem:[#allocation2 + $0x20] sm:$0xff]
    %v91 = vld [vmem:[#allocation2 + $0x28] sm:$0xff]
    %v92 = vld [vmem:[#allocation2 + $0x30] sm:$0xff]
    %v93 = vld [vmem:[#allocation2 + $0x38] sm:$0xff]
    %v96 = vunpack.c.l.b16 %v84
    %v97 = vunpack.c.l.b16 %v85
    %v98 = vpack.c.b16 %v97, %v96
    %v107 = vunpack.c.l.b16 %v86
    %v108 = vunpack.c.h.b16 %v86
    %v109 = vunpack.c.l.b16 %v87
    %v110 = vunpack.c.h.b16 %v87
    %v111 = vunpack.c.l.b16 %v88
    %v112 = vunpack.c.h.b16 %v88
    %v113 = vunpack.c.l.b16 %v89
    %v114 = vunpack.c.h.b16 %v89
    %v115 = vunpack.c.l.b16 %v90
    %v116 = vunpack.c.h.b16 %v90
    %v117 = vunpack.c.l.b16 %v91
    %v118 = vunpack.c.h.b16 %v91
    %v119 = vunpack.c.l.b16 %v92
    %v120 = vunpack.c.h.b16 %v92
    %v121 = vunpack.c.l.b16 %v93
    %v122 = vunpack.c.h.b16 %v93
    %v123 = vpack.c.b16 %v109, %v107
    %v124 = vpack.c.b16 %v110, %v108
    %v125 = vpack.c.b16 %v113, %v111
    %v126 = vpack.c.b16 %v114, %v112
    %v127 = vpack.c.b16 %v117, %v115
    %v128 = vpack.c.b16 %v118, %v116
    %v129 = vpack.c.b16 %v121, %v119
    %v130 = vpack.c.b16 %v122, %v120
    %vm139 = vcmask 523264
    %v141 = vsel %vm139, %v98, 0
    %143 = vmatprep.subr.bf16.mxu0 0
    %144 = vmatpush1.bf16.msra.mxu0 0
    %145 = vmatprep.subr.bf16.mxu0 0
    %146 = vmatpush1.bf16.msra.mxu0 0
    %147 = vmatprep.subr.bf16.mxu0 0
    %148 = vmatpush1.bf16.msra.mxu0 0
    %149 = vmatprep.subr.bf16.mxu0 0
    %150 = vmatpush1.bf16.msra.mxu0 0
    %151 = vmatprep.subr.bf16.mxu0 %v130
    %152 = vmatpush1.bf16.msra.mxu0 %v129
    %153 = vmatprep.subr.bf16.mxu0 %v128
    %154 = vmatpush1.bf16.msra.mxu0 %v127
    %155 = vmatprep.subr.bf16.mxu0 %v126
    %156 = vmatpush1.bf16.msra.mxu0 %v125
    %157 = vmatprep.subr.bf16.mxu0 %v124
    %158 = vmatpush1.bf16.msra.mxu0 %v123
    %159 = vmatprep.subr.bf16.mxu0 0
    %160 = vmatpush2.bf16.msra.mxu0 0
    %161 = vmatprep.subr.bf16.mxu0 0
    %162 = vmatpush2.bf16.msra.mxu0 0
    %163 = vmatprep.subr.bf16.mxu0 0
    %164 = vmatpush2.bf16.msra.mxu0 0
    %165 = vmatprep.subr.bf16.mxu0 0
    %166 = vmatpush2.bf16.msra.mxu0 0
    %167 = vmatprep.subr.bf16.mxu0 0
    %168 = vmatpush2.bf16.msra.mxu0 0
    %169 = vmatprep.subr.bf16.mxu0 0
    %170 = vmatpush2.bf16.msra.mxu0 0
    %171 = vmatprep.subr.bf16.mxu0 0
    %172 = vmatpush2.bf16.msra.mxu0 0
    %173 = vmatprep.subr.bf16.mxu0 0
    %174 = vmatpush2.bf16.msra.mxu0 0
    %175 = vmatprep.mubr.bf16.mxu0 0
    %176 = vmatmul.mubr.bf16.gmra.mxu0 %v141
    %v177 = vpop.f32.mrf.mxu0
    %v178 = vadd.f32 0.0, %v177
    %v179 = vpop.f32.mrf.mxu0
    %v180 = vadd.f32 0.0, %v179
    %v181 = vpop.f32.mrf.mxu0
    %v182 = vadd.f32 0.0, %v181
    %v183 = vpop.f32.mrf.mxu0
    %v184 = vadd.f32 0.0, %v183
    %185 = vdwg.mxu0
    %v186 = vlaneseq
    %v187 = vshrl.u32 %v186, 7
    %v188 = vsub.s32 0, %v187
    %v189 = vrot.slane %v80, %v188
    %v190 = vadd.f32 %v178, %v189
    %v191 = vadd.f32 %v182, %v189
    %v192 = vxor.u32 %v190, 2147483648
    %v193 = vxor.u32 %v191, 2147483648
    %v194 = vmul.f32 %v192, 1.442695
    %v195 = vpow.pop %v194
    %v196 = vmul.f32 %v193, 1.442695
    %v197 = vpow.pop %v196
    %v198 = vadd.f32 %v195, 1.0
    %v199 = vadd.f32 %v197, 1.0
    %v200 = vrcp.pop %v198
    %v201 = vmul.f32 1.0, %v200
    %v202 = vrcp.pop %v199
    %v203 = vmul.f32 1.0, %v202
    %v204 = vmul.f32 %v190, %v201
    %v205 = vmul.f32 %v191, %v203
    %v206 = vld [vmem:[%s0] sm:$0xff]
    %v207 = vld [vmem:[%s0 + $0x8] sm:$0xff]
    %v208 = vld [vmem:[%s0 + $0x10] sm:$0xff]
    %v209 = vld [vmem:[%s0 + $0x18] sm:$0xff]
    %v210 = vpack.c.bf16 %v208, %v206
    %v211 = vpack.c.bf16 %v209, %v207
    %v212 = vld [vmem:[#allocation4] sm:$0xf]
    %v213 = vld [vmem:[#allocation4 + $0x4] sm:$0xf]
    %v214 = vld [vmem:[#allocation4 + $0x8] sm:$0xf]
    %v215 = vld [vmem:[#allocation4 + $0xc] sm:$0xf]
    %v216 = vld [vmem:[#allocation4 + $0x10] sm:$0xf]
    %v217 = vld [vmem:[#allocation4 + $0x14] sm:$0xf]
    %v218 = vld [vmem:[#allocation4 + $0x18] sm:$0xf]
    %v219 = vld [vmem:[#allocation4 + $0x1c] sm:$0xf]
    %v220 = vld [vmem:[#allocation4 + $0x20] sm:$0xf]
    %v221 = vld [vmem:[#allocation4 + $0x24] sm:$0xf]
    %v222 = vld [vmem:[#allocation4 + $0x28] sm:$0xf]
    %v223 = vld [vmem:[#allocation4 + $0x2c] sm:$0xf]
    %v224 = vld [vmem:[#allocation4 + $0x30] sm:$0xf]
    %v225 = vld [vmem:[#allocation4 + $0x34] sm:$0xf]
    %v226 = vld [vmem:[#allocation4 + $0x38] sm:$0xf]
    %v227 = vld [vmem:[#allocation4 + $0x3c] sm:$0xf]
    %v228 = vld [vmem:[#allocation4 + $0x40] sm:$0xf]
    %v229 = vld [vmem:[#allocation4 + $0x44] sm:$0xf]
    %v230 = vld [vmem:[#allocation4 + $0x48] sm:$0xf]
    %v231 = vld [vmem:[#allocation4 + $0x4c] sm:$0xf]
    %v232 = vld [vmem:[#allocation4 + $0x50] sm:$0xf]
    %v233 = vld [vmem:[#allocation4 + $0x54] sm:$0xf]
    %v234 = vld [vmem:[#allocation4 + $0x58] sm:$0xf]
    %v235 = vld [vmem:[#allocation4 + $0x5c] sm:$0xf]
    %v236 = vld [vmem:[#allocation4 + $0x60] sm:$0xf]
    %v237 = vld [vmem:[#allocation4 + $0x64] sm:$0xf]
    %v238 = vld [vmem:[#allocation4 + $0x68] sm:$0xf]
    %v239 = vld [vmem:[#allocation4 + $0x6c] sm:$0xf]
    %v240 = vld [vmem:[#allocation4 + $0x70] sm:$0xf]
    %v241 = vld [vmem:[#allocation4 + $0x74] sm:$0xf]
    %v242 = vld [vmem:[#allocation4 + $0x78] sm:$0xf]
    %v243 = vld [vmem:[#allocation4 + $0x7c] sm:$0xf]
    %v244 = vpack.c.bf16 %v205, %v204
    %v245 = vld [vmem:[#allocation6] sm:$0xf]
    %v246 = vld [vmem:[#allocation6 + $0x4] sm:$0xf]
    %v247 = vld [vmem:[#allocation6 + $0x8] sm:$0xf]
    %v248 = vld [vmem:[#allocation6 + $0xc] sm:$0xf]
    %v249 = vld [vmem:[#allocation6 + $0x10] sm:$0xf]
    %v250 = vld [vmem:[#allocation6 + $0x14] sm:$0xf]
    %v251 = vld [vmem:[#allocation6 + $0x18] sm:$0xf]
    %v252 = vld [vmem:[#allocation6 + $0x1c] sm:$0xf]
    %v253 = vld [vmem:[#allocation6 + $0x20] sm:$0xf]
    %v254 = vld [vmem:[#allocation6 + $0x24] sm:$0xf]
    %v255 = vld [vmem:[#allocation6 + $0x28] sm:$0xf]
    %v256 = vld [vmem:[#allocation6 + $0x2c] sm:$0xf]
    %v257 = vld [vmem:[#allocation6 + $0x30] sm:$0xf]
    %v258 = vld [vmem:[#allocation6 + $0x34] sm:$0xf]
    %v259 = vld [vmem:[#allocation6 + $0x38] sm:$0xf]
    %v260 = vld [vmem:[#allocation6 + $0x3c] sm:$0xf]
    %v277 = vunpack.c.l.b16 %v245
    %v278 = vunpack.c.l.b16 %v246
    %v279 = vunpack.c.l.b16 %v247
    %v280 = vunpack.c.l.b16 %v248
    %v281 = vunpack.c.l.b16 %v249
    %v282 = vunpack.c.l.b16 %v250
    %v283 = vunpack.c.l.b16 %v251
    %v284 = vunpack.c.l.b16 %v252
    %v285 = vunpack.c.l.b16 %v253
    %v286 = vunpack.c.l.b16 %v254
    %v287 = vunpack.c.l.b16 %v255
    %v288 = vunpack.c.l.b16 %v256
    %v289 = vunpack.c.l.b16 %v257
    %v290 = vunpack.c.l.b16 %v258
    %v291 = vunpack.c.l.b16 %v259
    %v292 = vunpack.c.l.b16 %v260
    %v293 = vpack.c.b16 %v278, %v277
    %v294 = vpack.c.b16 %v280, %v279
    %v295 = vpack.c.b16 %v282, %v281
    %v296 = vpack.c.b16 %v284, %v283
    %v297 = vpack.c.b16 %v286, %v285
    %v298 = vpack.c.b16 %v288, %v287
    %v299 = vpack.c.b16 %v290, %v289
    %v300 = vpack.c.b16 %v292, %v291
    %309 = vmatprep.subr.bf16.mxu0 0
    %310 = vmatpush1.bf16.msra.mxu0 %v300
    %311 = vmatprep.subr.bf16.mxu0 0
    %312 = vmatpush1.bf16.msra.mxu0 %v299
    %313 = vmatprep.subr.bf16.mxu0 0
    %314 = vmatpush1.bf16.msra.mxu0 %v298
    %315 = vmatprep.subr.bf16.mxu0 0
    %316 = vmatpush1.bf16.msra.mxu0 %v297
    %317 = vmatprep.subr.bf16.mxu0 0
    %318 = vmatpush1.bf16.msra.mxu0 %v296
    %319 = vmatprep.subr.bf16.mxu0 0
    %320 = vmatpush1.bf16.msra.mxu0 %v295
    %321 = vmatprep.subr.bf16.mxu0 0
    %322 = vmatpush1.bf16.msra.mxu0 %v294
    %323 = vmatprep.subr.bf16.mxu0 0
    %324 = vmatpush1.bf16.msra.mxu0 %v293
    %325 = vmatprep.subr.bf16.mxu0 0
    %326 = vmatpush2.bf16.msra.mxu0 0
    %327 = vmatprep.subr.bf16.mxu0 0
    %328 = vmatpush2.bf16.msra.mxu0 0
    %329 = vmatprep.subr.bf16.mxu0 0
    %330 = vmatpush2.bf16.msra.mxu0 0
    %331 = vmatprep.subr.bf16.mxu0 0
    %332 = vmatpush2.bf16.msra.mxu0 0
    %333 = vmatprep.subr.bf16.mxu0 0
    %334 = vmatpush2.bf16.msra.mxu0 0
    %335 = vmatprep.subr.bf16.mxu0 0
    %336 = vmatpush2.bf16.msra.mxu0 0
    %337 = vmatprep.subr.bf16.mxu0 0
    %338 = vmatpush2.bf16.msra.mxu0 0
    %339 = vmatprep.subr.bf16.mxu0 0
    %340 = vmatpush2.bf16.msra.mxu0 0
    %341 = vmatprep.mubr.bf16.mxu0 0
    %342 = vmatmul.mubr.bf16.gmra.mxu0 %v244
    %v343 = vpop.f32.mrf.mxu0
    %v344 = vadd.f32 0.0, %v343
    %v345 = vpop.f32.mrf.mxu0
    %v346 = vpop.f32.mrf.mxu0
    %v347 = vadd.f32 0.0, %v346
    %v348 = vpop.f32.mrf.mxu0
    %349 = vdwg.mxu0
    %v382 = vunpack.c.l.b16 %v212
    %v383 = vunpack.c.l.b16 %v213
    %v384 = vunpack.c.l.b16 %v214
    %v385 = vunpack.c.l.b16 %v215
    %v386 = vunpack.c.l.b16 %v216
    %v387 = vunpack.c.l.b16 %v217
    %v388 = vunpack.c.l.b16 %v218
    %v389 = vunpack.c.l.b16 %v219
    %v390 = vunpack.c.l.b16 %v220
    %v391 = vunpack.c.l.b16 %v221
    %v392 = vunpack.c.l.b16 %v222
    %v393 = vunpack.c.l.b16 %v223
    %v394 = vunpack.c.l.b16 %v224
    %v395 = vunpack.c.l.b16 %v225
    %v396 = vunpack.c.l.b16 %v226
    %v397 = vunpack.c.l.b16 %v227
    %v398 = vunpack.c.l.b16 %v228
    %v399 = vunpack.c.l.b16 %v229
    %v400 = vunpack.c.l.b16 %v230
    %v401 = vunpack.c.l.b16 %v231
    %v402 = vunpack.c.l.b16 %v232
    %v403 = vunpack.c.l.b16 %v233
    %v404 = vunpack.c.l.b16 %v234
    %v405 = vunpack.c.l.b16 %v235
    %v406 = vunpack.c.l.b16 %v236
    %v407 = vunpack.c.l.b16 %v237
    %v408 = vunpack.c.l.b16 %v238
    %v409 = vunpack.c.l.b16 %v239
    %v410 = vunpack.c.l.b16 %v240
    %v411 = vunpack.c.l.b16 %v241
    %v412 = vunpack.c.l.b16 %v242
    %v413 = vunpack.c.l.b16 %v243
    %v414 = vpack.c.b16 %v383, %v382
    %v415 = vpack.c.b16 %v385, %v384
    %v416 = vpack.c.b16 %v387, %v386
    %v417 = vpack.c.b16 %v389, %v388
    %v418 = vpack.c.b16 %v391, %v390
    %v419 = vpack.c.b16 %v393, %v392
    %v420 = vpack.c.b16 %v395, %v394
    %v421 = vpack.c.b16 %v397, %v396
    %v422 = vpack.c.b16 %v399, %v398
    %v423 = vpack.c.b16 %v401, %v400
    %v424 = vpack.c.b16 %v403, %v402
    %v425 = vpack.c.b16 %v405, %v404
    %v426 = vpack.c.b16 %v407, %v406
    %v427 = vpack.c.b16 %v409, %v408
    %v428 = vpack.c.b16 %v411, %v410
    %v429 = vpack.c.b16 %v413, %v412
    %446 = vmatprep.subr.bf16.mxu0 0
    %447 = vmatpush1.bf16.msra.mxu0 %v421
    %448 = vmatprep.subr.bf16.mxu0 0
    %449 = vmatpush1.bf16.msra.mxu0 %v420
    %450 = vmatprep.subr.bf16.mxu0 0
    %451 = vmatpush1.bf16.msra.mxu0 %v419
    %452 = vmatprep.subr.bf16.mxu0 0
    %453 = vmatpush1.bf16.msra.mxu0 %v418
    %454 = vmatprep.subr.bf16.mxu0 0
    %455 = vmatpush1.bf16.msra.mxu0 %v417
    %456 = vmatprep.subr.bf16.mxu0 0
    %457 = vmatpush1.bf16.msra.mxu0 %v416
    %458 = vmatprep.subr.bf16.mxu0 0
    %459 = vmatpush1.bf16.msra.mxu0 %v415
    %460 = vmatprep.subr.bf16.mxu0 0
    %461 = vmatpush1.bf16.msra.mxu0 %v414
    %462 = vmatprep.subr.bf16.mxu0 0
    %463 = vmatpush2.bf16.msra.mxu0 %v429
    %464 = vmatprep.subr.bf16.mxu0 0
    %465 = vmatpush2.bf16.msra.mxu0 %v428
    %466 = vmatprep.subr.bf16.mxu0 0
    %467 = vmatpush2.bf16.msra.mxu0 %v427
    %468 = vmatprep.subr.bf16.mxu0 0
    %469 = vmatpush2.bf16.msra.mxu0 %v426
    %470 = vmatprep.subr.bf16.mxu0 0
    %471 = vmatpush2.bf16.msra.mxu0 %v425
    %472 = vmatprep.subr.bf16.mxu0 0
    %473 = vmatpush2.bf16.msra.mxu0 %v424
    %474 = vmatprep.subr.bf16.mxu0 0
    %475 = vmatpush2.bf16.msra.mxu0 %v423
    %476 = vmatprep.subr.bf16.mxu0 0
    %477 = vmatpush2.bf16.msra.mxu0 %v422
    %478 = vmatprep.mubr.bf16.mxu0 %v211
    %479 = vmatmul.mubr.bf16.gmra.mxu0 %v210
    %v480 = vpop.f32.mrf.mxu0
    %v481 = vadd.f32 %v344, %v480
    %v482 = vpop.f32.mrf.mxu0
    %v483 = vpop.f32.mrf.mxu0
    %v484 = vadd.f32 %v347, %v483
    %v485 = vpop.f32.mrf.mxu0
    %486 = vdwg.mxu0
    %v487 = vadd.f32 %v481, %v180
    %v488 = vadd.f32 %v484, %v184
    %v489 = vlaneseq
    %v490 = vshrl.u32 %v489, 7
    %v491 = vsub.s32 0, %v490
    %v492 = vrot.slane %v81, %v491
    %v493 = vadd.f32 %v487, %v492
    %v494 = vadd.f32 %v488, %v492
    %v495 = vxor.u32 %v493, 2147483648
    %v496 = vxor.u32 %v494, 2147483648
    %v497 = vmul.f32 %v495, 1.442695
    %v498 = vpow.pop %v497
    %v499 = vmul.f32 %v496, 1.442695
    %v500 = vpow.pop %v499
    %v501 = vadd.f32 %v498, 1.0
    %v502 = vadd.f32 %v500, 1.0
    %v503 = vrcp.pop %v501
    %v504 = vmul.f32 1.0, %v503
    %v505 = vrcp.pop %v502
    %v506 = vmul.f32 1.0, %v505
    %v507 = vmul.f32 %v493, %v504
    %v508 = vmul.f32 %v494, %v506
    %v509 = vpack.c.bf16 %v508, %v507
    %v510 = vld [vmem:[%s5] sm:$0xff]
    %v511 = vld [vmem:[%s5 + $0x8] sm:$0xff]
    %v512 = vld [vmem:[%s5 + $0x10] sm:$0xff]
    %v513 = vld [vmem:[%s5 + $0x18] sm:$0xff]
    %v514 = vld [vmem:[%s5 + $0x20] sm:$0xff]
    %v515 = vld [vmem:[%s5 + $0x28] sm:$0xff]
    %v516 = vld [vmem:[%s5 + $0x30] sm:$0xff]
    %v517 = vld [vmem:[%s5 + $0x38] sm:$0xff]
    %v518 = vld [vmem:[%s5 + $0x40] sm:$0xff]
    %v519 = vld [vmem:[%s5 + $0x48] sm:$0xff]
    %v520 = vld [vmem:[%s5 + $0x50] sm:$0xff]
    %v521 = vld [vmem:[%s5 + $0x58] sm:$0xff]
    %v522 = vld [vmem:[%s5 + $0x60] sm:$0xff]
    %v523 = vld [vmem:[%s5 + $0x68] sm:$0xff]
    %v524 = vld [vmem:[%s5 + $0x70] sm:$0xff]
    %v525 = vld [vmem:[%s5 + $0x78] sm:$0xff]
    %v527 = vlaneseq
    %v528 = vshrl.u32 %v527, 7
    %v529 = vsub.s32 0, %v528
    %v530 = vrot.slane %v83, %v529
    %v531 = vlaneseq
    %v532 = vshrl.u32 %v531, 7
    %v533 = vsub.s32 1, %v532
    %v534 = vrot.slane %v83, %v533
    %v553 = vunpack.c.l.b16 %v510
    %v554 = vunpack.c.h.b16 %v510
    %v555 = vunpack.c.l.b16 %v511
    %v556 = vunpack.c.h.b16 %v511
    %v557 = vunpack.c.l.b16 %v512
    %v558 = vunpack.c.h.b16 %v512
    %v559 = vunpack.c.l.b16 %v513
    %v560 = vunpack.c.h.b16 %v513
    %v561 = vunpack.c.l.b16 %v514
    %v562 = vunpack.c.h.b16 %v514
    %v563 = vunpack.c.l.b16 %v515
    %v564 = vunpack.c.h.b16 %v515
    %v565 = vunpack.c.l.b16 %v516
    %v566 = vunpack.c.h.b16 %v516
    %v567 = vunpack.c.l.b16 %v517
    %v568 = vunpack.c.h.b16 %v517
    %v569 = vunpack.c.l.b16 %v518
    %v570 = vunpack.c.h.b16 %v518
    %v571 = vunpack.c.l.b16 %v519
    %v572 = vunpack.c.h.b16 %v519
    %v573 = vunpack.c.l.b16 %v520
    %v574 = vunpack.c.h.b16 %v520
    %v575 = vunpack.c.l.b16 %v521
    %v576 = vunpack.c.h.b16 %v521
    %v577 = vunpack.c.l.b16 %v522
    %v578 = vunpack.c.h.b16 %v522
    %v579 = vunpack.c.l.b16 %v523
    %v580 = vunpack.c.h.b16 %v523
    %v581 = vunpack.c.l.b16 %v524
    %v582 = vunpack.c.h.b16 %v524
    %v583 = vunpack.c.l.b16 %v525
    %v584 = vunpack.c.h.b16 %v525
    %v585 = vpack.c.b16 %v555, %v553
    %v586 = vpack.c.b16 %v556, %v554
    %v587 = vpack.c.b16 %v559, %v557
    %v588 = vpack.c.b16 %v560, %v558
    %v589 = vpack.c.b16 %v563, %v561
    %v590 = vpack.c.b16 %v564, %v562
    %v591 = vpack.c.b16 %v567, %v565
    %v592 = vpack.c.b16 %v568, %v566
    %v593 = vpack.c.b16 %v571, %v569
    %v594 = vpack.c.b16 %v572, %v570
    %v595 = vpack.c.b16 %v575, %v573
    %v596 = vpack.c.b16 %v576, %v574
    %v597 = vpack.c.b16 %v579, %v577
    %v598 = vpack.c.b16 %v580, %v578
    %v599 = vpack.c.b16 %v583, %v581
    %v600 = vpack.c.b16 %v584, %v582
    %617 = vmatprep.subr.bf16.mxu0 %v600
    %618 = vmatpush1.bf16.msra.mxu0 %v599
    %619 = vmatprep.subr.bf16.mxu0 %v598
    %620 = vmatpush1.bf16.msra.mxu0 %v597
    %621 = vmatprep.subr.bf16.mxu0 %v596
    %622 = vmatpush1.bf16.msra.mxu0 %v595
    %623 = vmatprep.subr.bf16.mxu0 %v594
    %624 = vmatpush1.bf16.msra.mxu0 %v593
    %625 = vmatprep.subr.bf16.mxu0 %v592
    %626 = vmatpush1.bf16.msra.mxu0 %v591
    %627 = vmatprep.subr.bf16.mxu0 %v590
    %628 = vmatpush1.bf16.msra.mxu0 %v589
    %629 = vmatprep.subr.bf16.mxu0 %v588
    %630 = vmatpush1.bf16.msra.mxu0 %v587
    %631 = vmatprep.subr.bf16.mxu0 %v586
    %632 = vmatpush1.bf16.msra.mxu0 %v585
    %633 = vmatprep.subr.bf16.mxu0 0
    %634 = vmatpush2.bf16.msra.mxu0 0
    %635 = vmatprep.subr.bf16.mxu0 0
    %636 = vmatpush2.bf16.msra.mxu0 0
    %637 = vmatprep.subr.bf16.mxu0 0
    %638 = vmatpush2.bf16.msra.mxu0 0
    %639 = vmatprep.subr.bf16.mxu0 0
    %640 = vmatpush2.bf16.msra.mxu0 0
    %641 = vmatprep.subr.bf16.mxu0 0
    %642 = vmatpush2.bf16.msra.mxu0 0
    %643 = vmatprep.subr.bf16.mxu0 0
    %644 = vmatpush2.bf16.msra.mxu0 0
    %645 = vmatprep.subr.bf16.mxu0 0
    %646 = vmatpush2.bf16.msra.mxu0 0
    %647 = vmatprep.subr.bf16.mxu0 0
    %648 = vmatpush2.bf16.msra.mxu0 0
    %649 = vmatprep.mubr.bf16.mxu0 0
    %650 = vmatmul.mubr.bf16.gmra.mxu0 %v509
    %v651 = vpop.f32.mrf.mxu0
    %v652 = vadd.f32 %v530, %v651
    %v653 = vpop.f32.mrf.mxu0
    %v654 = vadd.f32 %v534, %v653
    %v655 = vpop.f32.mrf.mxu0
    %v656 = vadd.f32 %v530, %v655
    %v657 = vpop.f32.mrf.mxu0
    %v658 = vadd.f32 %v534, %v657
    %659 = vdwg.mxu0
    %660 = vst [vmem:[%s7] sm:$0xff] %v652
    %661 = vst [vmem:[%s7 + $0x8] sm:$0xff] %v654
    %662 = vst [vmem:[%s7 + $0x10] sm:$0xff] %v656
    %663 = vst [vmem:[%s7 + $0x18] sm:$0xff] %v658
    // Predicated region
    $region46: #{_fwd.1} parent=1 // pred_check
      _
    $region47: #{_fwd.1} parent=1 // pred_check_branch
      %665 = sbr.rel (0) target = $region49
    $region48: #{_fwd.1} parent=1 // pred_region
      _
    $region49: #{_fwd.1} parent=1 // pred_fallthru
      _
    // Predicated region
    $region50: #{_fwd.1} parent=1 // pred_check
      _
    $region51: #{_fwd.1} parent=1 // pred_check_branch
      %667 = sbr.rel (0) target = $region53
    $region52: #{_fwd.1} parent=1 // pred_region
      _
    $region53: #{_fwd.1} parent=1 // pred_fallthru
      _
    %668 = vsyncpa [#allocation3], 1
    %669 = vsyncpa [#allocation5], 1
    %670 = vsyncpa [#allocation8], 1

</llo_original>
